<compile_context>
chip_gen: v7x
topology: tpu7x:2x2x1
jax: 0.10.0
libtpu: 0.0.40
codegen_flags: <defaults>
</compile_context>

<pallas_src>
import functools

import jax
import jax.numpy as jnp
import numpy as np
from jax.experimental import pallas as pl
from jax.experimental.pallas import tpu as pltpu

# ---------------- model hyperparameters (compile-time constants) ----------------
N_BATCH = 8
INPUT_DIM = 16
LATENT_DIM = 3
WIDTHS = [32, 16]
POLY_ORDER = 3
INCLUDE_SINE = False

FEAT_PAD = 32                      # every layer width is zero-padded to this many lanes
ONES_LANE = LATENT_DIM             # padded-z lane that carries the constant 1 for Theta
N_LAYERS = len(WIDTHS) + 1         # layers per half (encoder / decoder)


def _library_dim(latent_dim, poly_order, include_sine):
    d = 1 + latent_dim
    if poly_order > 1:
        d += sum(1 for i in range(latent_dim) for j in range(i, latent_dim))
    if poly_order > 2:
        d += sum(1 for i in range(latent_dim) for j in range(i, latent_dim)
                 for k in range(j, latent_dim))
    if poly_order > 3:
        d += sum(1 for i in range(latent_dim) for j in range(i, latent_dim)
                 for k in range(j, latent_dim) for p in range(k, latent_dim))
    if poly_order > 4:
        d += sum(1 for i in range(latent_dim) for j in range(i, latent_dim)
                 for k in range(j, latent_dim) for p in range(k, latent_dim)
                 for q in range(p, latent_dim))
    if include_sine:
        d += latent_dim
    return d


LIBRARY_DIM = _library_dim(LATENT_DIM, POLY_ORDER, INCLUDE_SINE)

# packed-output layout: [z | x_decode | dz | dx_decode | Theta | sindy_predict | zero pad]
_PACK_SIZES = (LATENT_DIM, INPUT_DIM, LATENT_DIM, INPUT_DIM, LIBRARY_DIM, LATENT_DIM)
PACK_WIDTH = int(sum(_PACK_SIZES))          # 61
OUT_WIDTH = 128                             # lane-dense single output slab
_PACK_OFFS = np.cumsum((0,) + _PACK_SIZES)


# ---------------- compile-time SINDy selector matrices ----------------
def _poly_terms(latent_dim, poly_order):
    terms = [()]
    for i in range(latent_dim):
        terms.append((i,))
    if poly_order > 1:
        for i in range(latent_dim):
            for j in range(i, latent_dim):
                terms.append((i, j))
    if poly_order > 2:
        for i in range(latent_dim):
            for j in range(i, latent_dim):
                for k in range(j, latent_dim):
                    terms.append((i, j, k))
    return terms


def _build_selector_slab():
    # TODO(synk): sine library terms are not expressible as a pure 3-factor product; this
    #             configuration uses include_sine=False so they are not needed here.
    terms = _poly_terms(LATENT_DIM, POLY_ORDER)
    assert len(terms) == LIBRARY_DIM
    s = np.zeros((POLY_ORDER, FEAT_PAD, LIBRARY_DIM), np.float32)
    for m, t in enumerate(terms):
        for a in range(POLY_ORDER):
            row = t[a] if a < len(t) else ONES_LANE   # unused factor slots pick the 1-lane
            s[a, row, m] = 1.0
    return jnp.asarray(s)


# ---------------- the fused Pallas kernel ----------------
def _full_network_kernel(n, xdx_ref, wslab_ref, bslab_ref, coeff_ref, sslab_ref, out_ref):
    f32 = jnp.float32

    def bias(layer):
        return bslab_ref[pl.ds(layer, 1), :]                      # (1, FEAT_PAD)

    def stacked_layer(s, layer, last):
        # One MXU push carries BOTH the activation path (rows 0..n-1) and the derivative
        # path (rows n..2n-1): they share the same weight tile.
        sw = jnp.dot(s, wslab_ref[layer], preferred_element_type=f32)
        top = sw[:n] + bias(layer)                                # pre-activation
        bot = sw[n:]                                              # d @ W (no bias)
        if last:
            return top, bot
        h = jnp.maximum(top, 0.0)
        d = jnp.where(top > 0, bot, 0.0)                          # relu mask, no extra mul
        return jnp.concatenate([h, d], axis=0), None

    # ---- encoder forward + dz, stacked [x ; dx] -----------------------------------
    s = xdx_ref[...]                                              # (2n, FEAT_PAD)
    for l in range(N_LAYERS - 1):
        s, _ = stacked_layer(s, l, last=False)
    z, dz = stacked_layer(s, N_LAYERS - 1, last=True)             # (n, FEAT_PAD) each

    # ---- SINDy library via selector matmuls ----------------------------------------
    lane = jax.lax.broadcasted_iota(jnp.int32, (n, FEAT_PAD), 1)
    z1 = jnp.where(lane == ONES_LANE, 1.0, z)                     # append constant-1 lane
    theta = jnp.dot(z1, sslab_ref[0], preferred_element_type=f32)
    for a in range(1, POLY_ORDER):
        theta = theta * jnp.dot(z1, sslab_ref[a], preferred_element_type=f32)
    # theta: (n, LIBRARY_DIM)

    # ---- sindy_predict = Theta @ coefficients (coefficients lane-padded) -----------
    spred = jnp.dot(theta, coeff_ref[...], preferred_element_type=f32)   # (n, FEAT_PAD)

    # ---- decoder forward + dx_decode, stacked [z ; sindy_predict] ------------------
    s = jnp.concatenate([z, spred], axis=0)                       # (2n, FEAT_PAD)
    for l in range(N_LAYERS - 1):
        s, _ = stacked_layer(s, N_LAYERS + l, last=False)
    xdec, dxdec = stacked_layer(s, 2 * N_LAYERS - 1, last=True)   # (n, FEAT_PAD) each

    # ---- single lane-dense packed output -------------------------------------------
    pad = jnp.zeros((n, OUT_WIDTH - PACK_WIDTH), f32)
    out_ref[...] = jnp.concatenate(
        [z[:, :LATENT_DIM], xdec[:, :INPUT_DIM], dz[:, :LATENT_DIM],
         dxdec[:, :INPUT_DIM], theta, spred[:, :LATENT_DIM], pad], axis=1)


# ---------------- wrapper ----------------
def full_network_forward(x, dx, enc_w, enc_b, dec_w, dec_b, sindy_coefficients):
    """Weights in [in, out] layout; biases as [1, out]."""
    n = x.shape[0]
    assert n % 8 == 0, "batch must be a multiple of 8 for the sublane-aligned stacking"

    def pad2(a, rows, cols):
        buf = jnp.zeros((rows, cols), jnp.float32)
        return buf.at[:a.shape[0], :a.shape[1]].set(a.astype(jnp.float32))

    # host-side packing into a few tile-friendly slabs
    xdx = jnp.concatenate([pad2(x, n, FEAT_PAD), pad2(dx, n, FEAT_PAD)], axis=0)
    all_w = list(enc_w) + list(dec_w)
    all_b = list(enc_b) + list(dec_b)
    wslab = jnp.stack([pad2(w, FEAT_PAD, FEAT_PAD) for w in all_w])          # (6, 32, 32)
    bslab = jnp.concatenate([pad2(b, 1, FEAT_PAD) for b in all_b], axis=0)   # (6, 32)
    coeff = pad2(sindy_coefficients, LIBRARY_DIM, FEAT_PAD)                  # (20, 32)
    sslab = _build_selector_slab()                                           # (3, 32, 20)

    vmem = pl.BlockSpec(memory_space=pltpu.MemorySpace.VMEM)
    packed = pl.pallas_call(
        functools.partial(_full_network_kernel, n),
        out_shape=jax.ShapeDtypeStruct((n, OUT_WIDTH), jnp.float32),
        in_specs=[vmem] * 5,
        out_specs=vmem,
    )(xdx, wslab, bslab, coeff, sslab)

    pieces = [packed[:, int(_PACK_OFFS[i]):int(_PACK_OFFS[i + 1])]
              for i in range(len(_PACK_SIZES))]
    z, x_decode, dz, dx_decode, theta, sindy_predict = pieces

    network = {
        "x": x, "dx": dx,
        "z": z, "dz": dz,
        "x_decode": x_decode, "dx_decode": dx_decode,
        "encoder_weights": enc_w, "encoder_biases": enc_b,
        "decoder_weights": dec_w, "decoder_biases": dec_b,
        "Theta": theta,
        "sindy_coefficients": sindy_coefficients,
        "dz_predict": sindy_predict,
    }
    return network


# ---------------- pure-JAX reference (for correctness check) ----------------
def _reference(x, dx, enc_w, enc_b, dec_w, dec_b, coeffs):
    def fwd_relu(h, ws, bs):
        for w, b in zip(ws[:-1], bs[:-1]):
            h = jnp.maximum(h @ w + b, 0.0)
        return h @ ws[-1] + bs[-1]

    def zderiv_relu(h, d, ws, bs):
        for w, b in zip(ws[:-1], bs[:-1]):
            pre = h @ w + b
            d = jnp.where(pre > 0, 1.0, 0.0) * (d @ w)
            h = jnp.maximum(pre, 0.0)
        return d @ ws[-1]

    z = fwd_relu(x, enc_w, enc_b)
    x_decode = fwd_relu(z, dec_w, dec_b)
    dz = zderiv_relu(x, dx, enc_w, enc_b)

    cols = [jnp.ones((z.shape[0], 1))]
    for i in range(LATENT_DIM):
        cols.append(z[:, i:i + 1])
    for i in range(LATENT_DIM):
        for j in range(i, LATENT_DIM):
            cols.append(z[:, i:i + 1] * z[:, j:j + 1])
    for i in range(LATENT_DIM):
        for j in range(i, LATENT_DIM):
            for k in range(j, LATENT_DIM):
                cols.append(z[:, i:i + 1] * z[:, j:j + 1] * z[:, k:k + 1])
    theta = jnp.concatenate(cols, axis=1)
    spred = theta @ coeffs
    dx_decode = zderiv_relu(z, spred, dec_w, dec_b)
    return z, x_decode, dz, dx_decode, theta, spred


if __name__ == "__main__":
    key = jax.random.PRNGKey(0)
    keys = jax.random.split(key, 16)

    # inputs: x and dx (time snapshots x state variables)
    x = jax.random.normal(keys[0], (N_BATCH, INPUT_DIM), jnp.float32)
    dx = jax.random.normal(keys[1], (N_BATCH, INPUT_DIM), jnp.float32)

    # deterministic parameter init (encoder: 16->32->16->3, decoder: 3->32->16->16)
    enc_dims = [INPUT_DIM] + WIDTHS + [LATENT_DIM]
    dec_dims = [LATENT_DIM] + WIDTHS + [INPUT_DIM]

    def make_layers(dims, key_offset):
        ws, bs = [], []
        for li, (din, dout) in enumerate(zip(dims[:-1], dims[1:])):
            kw = keys[key_offset + 2 * li]
            kb = keys[key_offset + 2 * li + 1]
            ws.append(0.2 * jax.random.normal(kw, (din, dout), jnp.float32))  # [in, out]
            bs.append(0.1 * jax.random.normal(kb, (1, dout), jnp.float32))    # [1, out]
        return ws, bs

    enc_w, enc_b = make_layers(enc_dims, 2)
    dec_w, dec_b = make_layers(dec_dims, 8)

    # 'normal' coefficient initialization, deterministic
    sindy_coefficients = jax.random.normal(keys[14], (LIBRARY_DIM, LATENT_DIM), jnp.float32)

    # TODO(synk): include_SVD branch (torch.linalg.svd) is not implemented in-kernel;
    #             this configuration uses include_SVD=False as permitted by params.

    net = full_network_forward(x, dx, enc_w, enc_b, dec_w, dec_b, sindy_coefficients)
    jax.block_until_ready(net["dx_decode"])

    # correctness check vs. pure-JAX reference
    ref = _reference(x, dx, enc_w, enc_b, dec_w, dec_b, sindy_coefficients)
    got = (net["z"], net["x_decode"], net["dz"], net["dx_decode"],
           net["Theta"], net["dz_predict"])
    for r, g in zip(ref, got):
        np.testing.assert_allclose(np.asarray(g), np.asarray(r), rtol=1e-4, atol=1e-4)

    print("KERNEL_OK")
</pallas_src>

<mosaic_0001>
module attributes {stable_mosaic.version = 11 : i64} {
  func.func @_full_network_kernel(%arg0: memref<16x32xf32, #tpu.memory_space<vmem>>, %arg1: memref<6x32x32xf32, #tpu.memory_space<vmem>>, %arg2: memref<6x32xf32, #tpu.memory_space<vmem>>, %arg3: memref<20x32xf32, #tpu.memory_space<vmem>>, %arg4: memref<3x32x20xf32, #tpu.memory_space<vmem>>, %arg5: memref<8x128xf32, #tpu.memory_space<vmem>>) attributes {dimension_semantics = [], scalar_prefetch = 0 : i64, scratch_operands = 0 : i64, tpu.core_type = #tpu.core_type<tc>} {
    %c0 = arith.constant 0 : index
    %c0_0 = arith.constant 0 : index
    %0 = vector.load %arg0[%c0, %c0_0] : memref<16x32xf32, #tpu.memory_space<vmem>>, vector<16x32xf32>
    %c0_1 = arith.constant 0 : index
    %c0_2 = arith.constant 0 : index
    %c0_3 = arith.constant 0 : index
    %1 = vector.load %arg1[%c0_1, %c0_2, %c0_3] : memref<6x32x32xf32, #tpu.memory_space<vmem>>, vector<1x32x32xf32>
    %2 = vector.shape_cast %1 : vector<1x32x32xf32> to vector<32x32xf32>
    %cst = arith.constant dense<0.000000e+00> : vector<16x32xf32>
    %3 = tpu.matmul %0, %2, %cst {dimension_numbers = #tpu.dot_dimension_numbers<[1], [0], [0], [1], [0, 0, 1, 1], [], []>} : vector<16x32xf32>, vector<32x32xf32>, vector<16x32xf32> -> vector<16x32xf32>
    %4 = vector.extract_strided_slice %3 {offsets = [0, 0], sizes = [8, 32], strides = [1, 1]} : vector<16x32xf32> to vector<8x32xf32>
    %c0_4 = arith.constant 0 : index
    %c0_5 = arith.constant 0 : index
    %5 = vector.load %arg2[%c0_4, %c0_5] : memref<6x32xf32, #tpu.memory_space<vmem>>, vector<1x32xf32>
    %6 = vector.broadcast %5 : vector<1x32xf32> to vector<8x32xf32>
    %7 = arith.addf %4, %6 : vector<8x32xf32>
    %8 = vector.extract_strided_slice %3 {offsets = [8, 0], sizes = [8, 32], strides = [1, 1]} : vector<16x32xf32> to vector<8x32xf32>
    %cst_6 = arith.constant 0.000000e+00 : f32
    %9 = vector.broadcast %cst_6 : f32 to vector<8x32xf32>
    %10 = arith.maximumf %7, %9 : vector<8x32xf32>
    %cst_7 = arith.constant 0.000000e+00 : f32
    %11 = vector.broadcast %cst_7 : f32 to vector<8x32xf32>
    %12 = arith.cmpf ogt, %7, %11 : vector<8x32xf32>
    %cst_8 = arith.constant 0.000000e+00 : f32
    %13 = vector.broadcast %cst_8 : f32 to vector<8x32xf32>
    %14 = arith.select %12, %8, %13 : vector<8x32xi1>, vector<8x32xf32>
    %15 = tpu.concatenate %10, %14 in 0 : vector<8x32xf32>, vector<8x32xf32> -> vector<16x32xf32>
    %c1 = arith.constant 1 : index
    %c0_9 = arith.constant 0 : index
    %c0_10 = arith.constant 0 : index
    %16 = vector.load %arg1[%c1, %c0_9, %c0_10] : memref<6x32x32xf32, #tpu.memory_space<vmem>>, vector<1x32x32xf32>
    %17 = vector.shape_cast %16 : vector<1x32x32xf32> to vector<32x32xf32>
    %cst_11 = arith.constant dense<0.000000e+00> : vector<16x32xf32>
    %18 = tpu.matmul %15, %17, %cst_11 {dimension_numbers = #tpu.dot_dimension_numbers<[1], [0], [0], [1], [0, 0, 1, 1], [], []>} : vector<16x32xf32>, vector<32x32xf32>, vector<16x32xf32> -> vector<16x32xf32>
    %19 = vector.extract_strided_slice %18 {offsets = [0, 0], sizes = [8, 32], strides = [1, 1]} : vector<16x32xf32> to vector<8x32xf32>
    %c1_12 = arith.constant 1 : index
    %c0_13 = arith.constant 0 : index
    %20 = vector.load %arg2[%c1_12, %c0_13] : memref<6x32xf32, #tpu.memory_space<vmem>>, vector<1x32xf32>
    %21 = vector.broadcast %20 : vector<1x32xf32> to vector<8x32xf32>
    %22 = arith.addf %19, %21 : vector<8x32xf32>
    %23 = vector.extract_strided_slice %18 {offsets = [8, 0], sizes = [8, 32], strides = [1, 1]} : vector<16x32xf32> to vector<8x32xf32>
    %cst_14 = arith.constant 0.000000e+00 : f32
    %24 = vector.broadcast %cst_14 : f32 to vector<8x32xf32>
    %25 = arith.maximumf %22, %24 : vector<8x32xf32>
    %cst_15 = arith.constant 0.000000e+00 : f32
    %26 = vector.broadcast %cst_15 : f32 to vector<8x32xf32>
    %27 = arith.cmpf ogt, %22, %26 : vector<8x32xf32>
    %cst_16 = arith.constant 0.000000e+00 : f32
    %28 = vector.broadcast %cst_16 : f32 to vector<8x32xf32>
    %29 = arith.select %27, %23, %28 : vector<8x32xi1>, vector<8x32xf32>
    %30 = tpu.concatenate %25, %29 in 0 : vector<8x32xf32>, vector<8x32xf32> -> vector<16x32xf32>
    %c2 = arith.constant 2 : index
    %c0_17 = arith.constant 0 : index
    %c0_18 = arith.constant 0 : index
    %31 = vector.load %arg1[%c2, %c0_17, %c0_18] : memref<6x32x32xf32, #tpu.memory_space<vmem>>, vector<1x32x32xf32>
    %32 = vector.shape_cast %31 : vector<1x32x32xf32> to vector<32x32xf32>
    %cst_19 = arith.constant dense<0.000000e+00> : vector<16x32xf32>
    %33 = tpu.matmul %30, %32, %cst_19 {dimension_numbers = #tpu.dot_dimension_numbers<[1], [0], [0], [1], [0, 0, 1, 1], [], []>} : vector<16x32xf32>, vector<32x32xf32>, vector<16x32xf32> -> vector<16x32xf32>
    %34 = vector.extract_strided_slice %33 {offsets = [0, 0], sizes = [8, 32], strides = [1, 1]} : vector<16x32xf32> to vector<8x32xf32>
    %c2_20 = arith.constant 2 : index
    %c0_21 = arith.constant 0 : index
    %35 = vector.load %arg2[%c2_20, %c0_21] : memref<6x32xf32, #tpu.memory_space<vmem>>, vector<1x32xf32>
    %36 = vector.broadcast %35 : vector<1x32xf32> to vector<8x32xf32>
    %37 = arith.addf %34, %36 : vector<8x32xf32>
    %38 = vector.extract_strided_slice %33 {offsets = [8, 0], sizes = [8, 32], strides = [1, 1]} : vector<16x32xf32> to vector<8x32xf32>
    %39 = tpu.iota {dimensions = array<i32: 1>} : vector<8x32xi32>
    %c3_i32 = arith.constant 3 : i32
    %40 = vector.broadcast %c3_i32 : i32 to vector<8x32xi32>
    %41 = arith.cmpi eq, %39, %40 : vector<8x32xi32>
    %cst_22 = arith.constant 1.000000e+00 : f32
    %42 = vector.broadcast %cst_22 : f32 to vector<8x32xf32>
    %43 = arith.select %41, %42, %37 : vector<8x32xi1>, vector<8x32xf32>
    %c0_23 = arith.constant 0 : index
    %c0_24 = arith.constant 0 : index
    %c0_25 = arith.constant 0 : index
    %44 = vector.load %arg4[%c0_23, %c0_24, %c0_25] : memref<3x32x20xf32, #tpu.memory_space<vmem>>, vector<1x32x20xf32>
    %45 = vector.shape_cast %44 : vector<1x32x20xf32> to vector<32x20xf32>
    %cst_26 = arith.constant dense<0.000000e+00> : vector<8x20xf32>
    %46 = tpu.matmul %43, %45, %cst_26 {dimension_numbers = #tpu.dot_dimension_numbers<[1], [0], [0], [1], [0, 0, 1, 1], [], []>} : vector<8x32xf32>, vector<32x20xf32>, vector<8x20xf32> -> vector<8x20xf32>
    %c1_27 = arith.constant 1 : index
    %c0_28 = arith.constant 0 : index
    %c0_29 = arith.constant 0 : index
    %47 = vector.load %arg4[%c1_27, %c0_28, %c0_29] : memref<3x32x20xf32, #tpu.memory_space<vmem>>, vector<1x32x20xf32>
    %48 = vector.shape_cast %47 : vector<1x32x20xf32> to vector<32x20xf32>
    %cst_30 = arith.constant dense<0.000000e+00> : vector<8x20xf32>
    %49 = tpu.matmul %43, %48, %cst_30 {dimension_numbers = #tpu.dot_dimension_numbers<[1], [0], [0], [1], [0, 0, 1, 1], [], []>} : vector<8x32xf32>, vector<32x20xf32>, vector<8x20xf32> -> vector<8x20xf32>
    %50 = arith.mulf %46, %49 : vector<8x20xf32>
    %c2_31 = arith.constant 2 : index
    %c0_32 = arith.constant 0 : index
    %c0_33 = arith.constant 0 : index
    %51 = vector.load %arg4[%c2_31, %c0_32, %c0_33] : memref<3x32x20xf32, #tpu.memory_space<vmem>>, vector<1x32x20xf32>
    %52 = vector.shape_cast %51 : vector<1x32x20xf32> to vector<32x20xf32>
    %cst_34 = arith.constant dense<0.000000e+00> : vector<8x20xf32>
    %53 = tpu.matmul %43, %52, %cst_34 {dimension_numbers = #tpu.dot_dimension_numbers<[1], [0], [0], [1], [0, 0, 1, 1], [], []>} : vector<8x32xf32>, vector<32x20xf32>, vector<8x20xf32> -> vector<8x20xf32>
    %54 = arith.mulf %50, %53 : vector<8x20xf32>
    %c0_35 = arith.constant 0 : index
    %c0_36 = arith.constant 0 : index
    %55 = vector.load %arg3[%c0_35, %c0_36] : memref<20x32xf32, #tpu.memory_space<vmem>>, vector<20x32xf32>
    %cst_37 = arith.constant dense<0.000000e+00> : vector<8x32xf32>
    %56 = tpu.matmul %54, %55, %cst_37 {dimension_numbers = #tpu.dot_dimension_numbers<[1], [0], [0], [1], [0, 0, 1, 1], [], []>} : vector<8x20xf32>, vector<20x32xf32>, vector<8x32xf32> -> vector<8x32xf32>
    %57 = tpu.concatenate %37, %56 in 0 : vector<8x32xf32>, vector<8x32xf32> -> vector<16x32xf32>
    %c3 = arith.constant 3 : index
    %c0_38 = arith.constant 0 : index
    %c0_39 = arith.constant 0 : index
    %58 = vector.load %arg1[%c3, %c0_38, %c0_39] : memref<6x32x32xf32, #tpu.memory_space<vmem>>, vector<1x32x32xf32>
    %59 = vector.shape_cast %58 : vector<1x32x32xf32> to vector<32x32xf32>
    %cst_40 = arith.constant dense<0.000000e+00> : vector<16x32xf32>
    %60 = tpu.matmul %57, %59, %cst_40 {dimension_numbers = #tpu.dot_dimension_numbers<[1], [0], [0], [1], [0, 0, 1, 1], [], []>} : vector<16x32xf32>, vector<32x32xf32>, vector<16x32xf32> -> vector<16x32xf32>
    %61 = vector.extract_strided_slice %60 {offsets = [0, 0], sizes = [8, 32], strides = [1, 1]} : vector<16x32xf32> to vector<8x32xf32>
    %c3_41 = arith.constant 3 : index
    %c0_42 = arith.constant 0 : index
    %62 = vector.load %arg2[%c3_41, %c0_42] : memref<6x32xf32, #tpu.memory_space<vmem>>, vector<1x32xf32>
    %63 = vector.broadcast %62 : vector<1x32xf32> to vector<8x32xf32>
    %64 = arith.addf %61, %63 : vector<8x32xf32>
    %65 = vector.extract_strided_slice %60 {offsets = [8, 0], sizes = [8, 32], strides = [1, 1]} : vector<16x32xf32> to vector<8x32xf32>
    %cst_43 = arith.constant 0.000000e+00 : f32
    %66 = vector.broadcast %cst_43 : f32 to vector<8x32xf32>
    %67 = arith.maximumf %64, %66 : vector<8x32xf32>
    %cst_44 = arith.constant 0.000000e+00 : f32
    %68 = vector.broadcast %cst_44 : f32 to vector<8x32xf32>
    %69 = arith.cmpf ogt, %64, %68 : vector<8x32xf32>
    %cst_45 = arith.constant 0.000000e+00 : f32
    %70 = vector.broadcast %cst_45 : f32 to vector<8x32xf32>
    %71 = arith.select %69, %65, %70 : vector<8x32xi1>, vector<8x32xf32>
    %72 = tpu.concatenate %67, %71 in 0 : vector<8x32xf32>, vector<8x32xf32> -> vector<16x32xf32>
    %c4 = arith.constant 4 : index
    %c0_46 = arith.constant 0 : index
    %c0_47 = arith.constant 0 : index
    %73 = vector.load %arg1[%c4, %c0_46, %c0_47] : memref<6x32x32xf32, #tpu.memory_space<vmem>>, vector<1x32x32xf32>
    %74 = vector.shape_cast %73 : vector<1x32x32xf32> to vector<32x32xf32>
    %cst_48 = arith.constant dense<0.000000e+00> : vector<16x32xf32>
    %75 = tpu.matmul %72, %74, %cst_48 {dimension_numbers = #tpu.dot_dimension_numbers<[1], [0], [0], [1], [0, 0, 1, 1], [], []>} : vector<16x32xf32>, vector<32x32xf32>, vector<16x32xf32> -> vector<16x32xf32>
    %76 = vector.extract_strided_slice %75 {offsets = [0, 0], sizes = [8, 32], strides = [1, 1]} : vector<16x32xf32> to vector<8x32xf32>
    %c4_49 = arith.constant 4 : index
    %c0_50 = arith.constant 0 : index
    %77 = vector.load %arg2[%c4_49, %c0_50] : memref<6x32xf32, #tpu.memory_space<vmem>>, vector<1x32xf32>
    %78 = vector.broadcast %77 : vector<1x32xf32> to vector<8x32xf32>
    %79 = arith.addf %76, %78 : vector<8x32xf32>
    %80 = vector.extract_strided_slice %75 {offsets = [8, 0], sizes = [8, 32], strides = [1, 1]} : vector<16x32xf32> to vector<8x32xf32>
    %cst_51 = arith.constant 0.000000e+00 : f32
    %81 = vector.broadcast %cst_51 : f32 to vector<8x32xf32>
    %82 = arith.maximumf %79, %81 : vector<8x32xf32>
    %cst_52 = arith.constant 0.000000e+00 : f32
    %83 = vector.broadcast %cst_52 : f32 to vector<8x32xf32>
    %84 = arith.cmpf ogt, %79, %83 : vector<8x32xf32>
    %cst_53 = arith.constant 0.000000e+00 : f32
    %85 = vector.broadcast %cst_53 : f32 to vector<8x32xf32>
    %86 = arith.select %84, %80, %85 : vector<8x32xi1>, vector<8x32xf32>
    %87 = tpu.concatenate %82, %86 in 0 : vector<8x32xf32>, vector<8x32xf32> -> vector<16x32xf32>
    %c5 = arith.constant 5 : index
    %c0_54 = arith.constant 0 : index
    %c0_55 = arith.constant 0 : index
    %88 = vector.load %arg1[%c5, %c0_54, %c0_55] : memref<6x32x32xf32, #tpu.memory_space<vmem>>, vector<1x32x32xf32>
    %89 = vector.shape_cast %88 : vector<1x32x32xf32> to vector<32x32xf32>
    %cst_56 = arith.constant dense<0.000000e+00> : vector<16x32xf32>
    %90 = tpu.matmul %87, %89, %cst_56 {dimension_numbers = #tpu.dot_dimension_numbers<[1], [0], [0], [1], [0, 0, 1, 1], [], []>} : vector<16x32xf32>, vector<32x32xf32>, vector<16x32xf32> -> vector<16x32xf32>
    %91 = vector.extract_strided_slice %90 {offsets = [0, 0], sizes = [8, 32], strides = [1, 1]} : vector<16x32xf32> to vector<8x32xf32>
    %c5_57 = arith.constant 5 : index
    %c0_58 = arith.constant 0 : index
    %92 = vector.load %arg2[%c5_57, %c0_58] : memref<6x32xf32, #tpu.memory_space<vmem>>, vector<1x32xf32>
    %93 = vector.broadcast %92 : vector<1x32xf32> to vector<8x32xf32>
    %94 = arith.addf %91, %93 : vector<8x32xf32>
    %95 = vector.extract_strided_slice %90 {offsets = [8, 0], sizes = [8, 32], strides = [1, 1]} : vector<16x32xf32> to vector<8x32xf32>
    %cst_59 = arith.constant 0.000000e+00 : f32
    %96 = vector.broadcast %cst_59 : f32 to vector<8x67xf32>
    %97 = vector.extract_strided_slice %37 {offsets = [0, 0], sizes = [8, 3], strides = [1, 1]} : vector<8x32xf32> to vector<8x3xf32>
    %98 = vector.extract_strided_slice %94 {offsets = [0, 0], sizes = [8, 16], strides = [1, 1]} : vector<8x32xf32> to vector<8x16xf32>
    %99 = vector.extract_strided_slice %38 {offsets = [0, 0], sizes = [8, 3], strides = [1, 1]} : vector<8x32xf32> to vector<8x3xf32>
    %100 = vector.extract_strided_slice %95 {offsets = [0, 0], sizes = [8, 16], strides = [1, 1]} : vector<8x32xf32> to vector<8x16xf32>
    %101 = vector.extract_strided_slice %56 {offsets = [0, 0], sizes = [8, 3], strides = [1, 1]} : vector<8x32xf32> to vector<8x3xf32>
    %102 = tpu.concatenate %97, %98, %99, %100, %54, %101, %96 in 1 : vector<8x3xf32>, vector<8x16xf32>, vector<8x3xf32>, vector<8x16xf32>, vector<8x20xf32>, vector<8x3xf32>, vector<8x67xf32> -> vector<8x128xf32>
    %c0_60 = arith.constant 0 : index
    %c0_61 = arith.constant 0 : index
    %103 = vector.load %arg5[%c0_60, %c0_61] : memref<8x128xf32, #tpu.memory_space<vmem>>, vector<8x128xf32>
    tpu.vector_store %arg5[%c0_60, %c0_61], %102 {strides = array<i32>} : memref<8x128xf32, #tpu.memory_space<vmem>>, vector<8x128xf32>,
    return
  }
}

</mosaic_0001>

<llo_original>
// kernel: tpu_custom_call.1
$region0: #{tpu_custom_call.1}
  #allocation0 [shape = 'u32[]', space=smem, size = 0x4, offset = 0x4, fixed_abs, tag = 'smem constant byte address 0x4 - core index']
  #allocation1 [shape = 'u32[144,128]{1,0:T(1,128)}', space=vmem, size = 0x12000, scoped, tag = 'internal scratch']
  %s0 = inlined_call_operand.vmem [shape: f32[16,32], index: 0, kind: input, shape index: {}]
  %s1 = inlined_call_operand.hbm [shape: f32[6,32,32], index: 1, kind: input, shape index: {}]
  %s2 = inlined_call_operand.vmem [shape: f32[6,32], index: 2, kind: input, shape index: {}]
  %s3 = inlined_call_operand.vmem [shape: f32[20,32], index: 3, kind: input, shape index: {}]
  %s4 = inlined_call_operand.vmem [shape: f32[3,32,20], index: 4, kind: input, shape index: {}]
  %s5 = inlined_call_operand.hbm [shape: f32[8,128], index: 5, kind: output, shape index: {}]
  %s6 = sld [smem:[#allocation0]]
  $region34: #{tpu_custom_call.1} parent=0
    _
  %s8 = ssub.s32 1, %s6
  %s9 = scalar_select 0, %s8, %s6
  $region1: #{tpu_custom_call.1} parent=0
    #allocation2 [shape = 'u8[98304]{0}', space=vmem, size = 0x18000, scoped, tag = 'input window, operand 1, single buffered']
    #allocation3 [shape = 's32[1]{0}', space=sflag, size = 0x4, scoped, tag = 'scoped memory for tpu_custom_call.1']
    #allocation4 [shape = 's32[1]{0}', space=sflag, size = 0x4, scoped, tag = 'scoped memory for tpu_custom_call.1']
    #allocation5 [shape = 'u8[4096]{0}', space=vmem, size = 0x1000, scoped, tag = 'output window, operand 0, single buffered']
    %10 = vsyncpa [#allocation3], 0
    %11 = vsyncpa [#allocation4], 0
    // Predicated region
    $region2: #{tpu_custom_call.1} parent=1 // pred_check
      _
    $region3: #{tpu_custom_call.1} parent=1 // pred_check_branch
      %13 = sbr.rel (0) target = $region5
    $region4: #{tpu_custom_call.1} parent=1 // pred_region
      _
    $region5: #{tpu_custom_call.1} parent=1 // pred_fallthru
      _
    // Predicated region
    $region6: #{tpu_custom_call.1} parent=1 // pred_check
      _
    $region7: #{tpu_custom_call.1} parent=1 // pred_check_branch
      %15 = sbr.rel (0) target = $region9
    $region8: #{tpu_custom_call.1} parent=1 // pred_region
      %s17 = ssub.s32 3072, 3072
      %18 = vsyncadd [#allocation3], %s17
      %s19 = sshll.u32 [#allocation2], 4
      %s20 = int_to_ptr.vmem [resolvable:$true] %s19
      %25 = dma.hbm_to_vmem [thread:$0]  %s1, 3072, %s20, [#allocation3], 128, 128, 8
    $region9: #{tpu_custom_call.1} parent=1 // pred_fallthru
      _
    // Predicated region
    $region10: #{tpu_custom_call.1} parent=1 // pred_check
      _
    $region11: #{tpu_custom_call.1} parent=1 // pred_check_branch
      %27 = sbr.rel (0) target = $region13
    $region12: #{tpu_custom_call.1} parent=1 // pred_region
      _
    $region13: #{tpu_custom_call.1} parent=1 // pred_fallthru
      _
    // Predicated region
    $region14: #{tpu_custom_call.1} parent=1 // pred_check
      _
    $region15: #{tpu_custom_call.1} parent=1 // pred_check_branch
      %29 = sbr.rel (0) target = $region17
    $region16: #{tpu_custom_call.1} parent=1 // pred_region
      _
    $region17: #{tpu_custom_call.1} parent=1 // pred_fallthru
      _
    // Predicated region
    $region18: #{tpu_custom_call.1} parent=1 // pred_check
      _
    $region19: #{tpu_custom_call.1} parent=1 // pred_check_branch
      %31 = sbr.rel (0) target = $region21
    $region20: #{tpu_custom_call.1} parent=1 // pred_region
      _
    $region21: #{tpu_custom_call.1} parent=1 // pred_fallthru
      _
    // Predicated region
    $region22: #{tpu_custom_call.1} parent=1 // pred_check
      _
    $region23: #{tpu_custom_call.1} parent=1 // pred_check_branch
      %33 = sbr.rel (0) target = $region25
    $region24: #{tpu_custom_call.1} parent=1 // pred_region
      %34 = dma.done [#allocation3], 3072
    $region25: #{tpu_custom_call.1} parent=1 // pred_fallthru
      _
    %v35 = vld [vmem:[%s0] sm:$0xff]
    %v36 = vld [vmem:[%s0 + $0x8] sm:$0xff]
    %v37 = vld [vmem:[#allocation2] sm:$0xff]
    %v38 = vld [vmem:[#allocation2 + $0x8] sm:$0xff]
    %v39 = vld [vmem:[#allocation2 + $0x10] sm:$0xff]
    %v40 = vld [vmem:[#allocation2 + $0x18] sm:$0xff]
    %vm41 = vcmask 261120
    %v43 = vsel %vm41, %v35, 0
    %v46 = vsel %vm41, %v36, 0
    %48 = vmatprep.subr.mxu0 0.0
    %49 = vmatpush1.msra.mxu0 %v37
    %50 = vmatprep.subr.mxu0 0.0
    %51 = vmatpush1.msra.mxu0 %v38
    %52 = vmatprep.subr.mxu0 0.0
    %53 = vmatpush1.msra.mxu0 %v39
    %54 = vmatprep.subr.mxu0 0.0
    %55 = vmatpush1.msra.mxu0 %v40
    %56 = vmatprep.subr.mxu0 0.0
    %57 = vmatpush1.msra.mxu0 0.0
    %58 = vmatprep.subr.mxu0 0.0
    %59 = vmatpush1.msra.mxu0 0.0
    %60 = vmatprep.subr.mxu0 0.0
    %61 = vmatpush1.msra.mxu0 0.0
    %62 = vmatprep.subr.mxu0 0.0
    %63 = vmatpush1.msra.mxu0 0.0
    %64 = vmatprep.subr.mxu0 0.0
    %65 = vmatpush1.msra.mxu0 0.0
    %66 = vmatprep.subr.mxu0 0.0
    %67 = vmatpush1.msra.mxu0 0.0
    %68 = vmatprep.subr.mxu0 0.0
    %69 = vmatpush1.msra.mxu0 0.0
    %70 = vmatprep.subr.mxu0 0.0
    %71 = vmatpush1.msra.mxu0 0.0
    %72 = vmatprep.subr.mxu0 0.0
    %73 = vmatpush1.msra.mxu0 0.0
    %74 = vmatprep.subr.mxu0 0.0
    %75 = vmatpush1.msra.mxu0 0.0
    %76 = vmatprep.subr.mxu0 0.0
    %77 = vmatpush1.msra.mxu0 0.0
    %78 = vmatprep.subr.mxu0 0.0
    %79 = vmatpush1.msra.mxu0 0.0
    %80 = vmatprep.subr.mxu0 0.0
    %81 = vmatpush1.msra.mxu0 0.0
    %82 = vmatprep.subr.mxu0 0.0
    %83 = vmatpush1.msra.mxu0 0.0
    %84 = vmatprep.subr.mxu0 0.0
    %85 = vmatpush1.msra.mxu0 0.0
    %86 = vmatprep.subr.mxu0 0.0
    %87 = vmatpush1.msra.mxu0 0.0
    %88 = vmatprep.subr.mxu0 0.0
    %89 = vmatpush1.msra.mxu0 0.0
    %90 = vmatprep.subr.mxu0 0.0
    %91 = vmatpush1.msra.mxu0 0.0
    %92 = vmatprep.subr.mxu0 0.0
    %93 = vmatpush1.msra.mxu0 0.0
    %94 = vmatprep.subr.mxu0 0.0
    %95 = vmatpush1.msra.mxu0 0.0
    %96 = vmatprep.subr.mxu0 0.0
    %97 = vmatpush1.msra.mxu0 0.0
    %98 = vmatprep.subr.mxu0 0.0
    %99 = vmatpush1.msra.mxu0 0.0
    %100 = vmatprep.subr.mxu0 0.0
    %101 = vmatpush1.msra.mxu0 0.0
    %102 = vmatprep.subr.mxu0 0.0
    %103 = vmatpush1.msra.mxu0 0.0
    %104 = vmatprep.subr.mxu0 0.0
    %105 = vmatpush1.msra.mxu0 0.0
    %106 = vmatprep.subr.mxu0 0.0
    %107 = vmatpush1.msra.mxu0 0.0
    %108 = vmatprep.subr.mxu0 0.0
    %109 = vmatpush1.msra.mxu0 0.0
    %110 = vmatprep.subr.mxu0 0.0
    %111 = vmatpush1.msra.mxu0 0.0
    %112 = vmatprep.mubr.f32.mxu0 0.0
    %113 = vmatmul.mubr.f32.gmra.mrb[0].mxu0 %v43
    %v114 = vpop.f32.mrb[0].mxu0
    %v115 = vadd.f32 0.0, %v114
    %v116 = vpop.f32.mrb[0].mxu0
    %117 = vmatprep.mubr.f32.mxu0 0.0
    %118 = vmatmul.mubr.f32.gmra.mrb[0].mxu0 %v46
    %v119 = vpop.f32.mrb[0].mxu0
    %v120 = vadd.f32 0.0, %v119
    %v121 = vpop.f32.mrb[0].mxu0
    %122 = vdwg.mxu0
    %v123 = vld [vmem:[%s2] sm:$0x1]
    %v124 = vlaneseq
    %v125 = vshrl.u32 %v124, 7
    %v126 = vsub.s32 0, %v125
    %v127 = vrot.slane %v123, %v126
    %v128 = vadd.f32 %v115, %v127
    %v129 = vmax.f32 %v128, 0.0
    %vm130 = vcmp.gt.f32.partialorder %v128, 0.0
    %v131 = vsel %vm130, %v120, 0.0
    %s132 = scalar_lea.vmem [#allocation2], 32
    %v133 = vld [vmem:[%s132] sm:$0xff]
    %v134 = vld [vmem:[%s132 + $0x8] sm:$0xff]
    %v135 = vld [vmem:[%s132 + $0x10] sm:$0xff]
    %v136 = vld [vmem:[%s132 + $0x18] sm:$0xff]
    %v138 = vsel %vm41, %v129, 0
    %v141 = vsel %vm41, %v131, 0
    %143 = vmatprep.subr.mxu0 0.0
    %144 = vmatpush1.msra.mxu0 %v133
    %145 = vmatprep.subr.mxu0 0.0
    %146 = vmatpush1.msra.mxu0 %v134
    %147 = vmatprep.subr.mxu0 0.0
    %148 = vmatpush1.msra.mxu0 %v135
    %149 = vmatprep.subr.mxu0 0.0
    %150 = vmatpush1.msra.mxu0 %v136
    %151 = vmatprep.subr.mxu0 0.0
    %152 = vmatpush1.msra.mxu0 0.0
    %153 = vmatprep.subr.mxu0 0.0
    %154 = vmatpush1.msra.mxu0 0.0
    %155 = vmatprep.subr.mxu0 0.0
    %156 = vmatpush1.msra.mxu0 0.0
    %157 = vmatprep.subr.mxu0 0.0
    %158 = vmatpush1.msra.mxu0 0.0
    %159 = vmatprep.subr.mxu0 0.0
    %160 = vmatpush1.msra.mxu0 0.0
    %161 = vmatprep.subr.mxu0 0.0
    %162 = vmatpush1.msra.mxu0 0.0
    %163 = vmatprep.subr.mxu0 0.0
    %164 = vmatpush1.msra.mxu0 0.0
    %165 = vmatprep.subr.mxu0 0.0
    %166 = vmatpush1.msra.mxu0 0.0
    %167 = vmatprep.subr.mxu0 0.0
    %168 = vmatpush1.msra.mxu0 0.0
    %169 = vmatprep.subr.mxu0 0.0
    %170 = vmatpush1.msra.mxu0 0.0
    %171 = vmatprep.subr.mxu0 0.0
    %172 = vmatpush1.msra.mxu0 0.0
    %173 = vmatprep.subr.mxu0 0.0
    %174 = vmatpush1.msra.mxu0 0.0
    %175 = vmatprep.subr.mxu0 0.0
    %176 = vmatpush1.msra.mxu0 0.0
    %177 = vmatprep.subr.mxu0 0.0
    %178 = vmatpush1.msra.mxu0 0.0
    %179 = vmatprep.subr.mxu0 0.0
    %180 = vmatpush1.msra.mxu0 0.0
    %181 = vmatprep.subr.mxu0 0.0
    %182 = vmatpush1.msra.mxu0 0.0
    %183 = vmatprep.subr.mxu0 0.0
    %184 = vmatpush1.msra.mxu0 0.0
    %185 = vmatprep.subr.mxu0 0.0
    %186 = vmatpush1.msra.mxu0 0.0
    %187 = vmatprep.subr.mxu0 0.0
    %188 = vmatpush1.msra.mxu0 0.0
    %189 = vmatprep.subr.mxu0 0.0
    %190 = vmatpush1.msra.mxu0 0.0
    %191 = vmatprep.subr.mxu0 0.0
    %192 = vmatpush1.msra.mxu0 0.0
    %193 = vmatprep.subr.mxu0 0.0
    %194 = vmatpush1.msra.mxu0 0.0
    %195 = vmatprep.subr.mxu0 0.0
    %196 = vmatpush1.msra.mxu0 0.0
    %197 = vmatprep.subr.mxu0 0.0
    %198 = vmatpush1.msra.mxu0 0.0
    %199 = vmatprep.subr.mxu0 0.0
    %200 = vmatpush1.msra.mxu0 0.0
    %201 = vmatprep.subr.mxu0 0.0
    %202 = vmatpush1.msra.mxu0 0.0
    %203 = vmatprep.subr.mxu0 0.0
    %204 = vmatpush1.msra.mxu0 0.0
    %205 = vmatprep.subr.mxu0 0.0
    %206 = vmatpush1.msra.mxu0 0.0
    %207 = vmatprep.mubr.f32.mxu0 0.0
    %208 = vmatmul.mubr.f32.gmra.mrb[0].mxu0 %v138
    %v209 = vpop.f32.mrb[0].mxu0
    %v210 = vadd.f32 0.0, %v209
    %v211 = vpop.f32.mrb[0].mxu0
    %212 = vmatprep.mubr.f32.mxu0 0.0
    %213 = vmatmul.mubr.f32.gmra.mrb[0].mxu0 %v141
    %v214 = vpop.f32.mrb[0].mxu0
    %v215 = vadd.f32 0.0, %v214
    %v216 = vpop.f32.mrb[0].mxu0
    %217 = vdwg.mxu0
    %v218 = vld [vmem:[%s2 + $0x1] sm:$0x1]
    %v219 = vlaneseq
    %v220 = vshrl.u32 %v219, 7
    %v221 = vsub.s32 0, %v220
    %v222 = vrot.slane %v218, %v221
    %v223 = vadd.f32 %v210, %v222
    %v224 = vmax.f32 %v223, 0.0
    %vm225 = vcmp.gt.f32.partialorder %v223, 0.0
    %v226 = vsel %vm225, %v215, 0.0
    %s227 = scalar_lea.vmem [#allocation2], 64
    %v228 = vld [vmem:[%s227] sm:$0xff]
    %v229 = vld [vmem:[%s227 + $0x8] sm:$0xff]
    %v230 = vld [vmem:[%s227 + $0x10] sm:$0xff]
    %v231 = vld [vmem:[%s227 + $0x18] sm:$0xff]
    %v233 = vsel %vm41, %v224, 0
    %v236 = vsel %vm41, %v226, 0
    %238 = vmatprep.subr.mxu0 0.0
    %239 = vmatpush1.msra.mxu0 %v228
    %240 = vmatprep.subr.mxu0 0.0
    %241 = vmatpush1.msra.mxu0 %v229
    %242 = vmatprep.subr.mxu0 0.0
    %243 = vmatpush1.msra.mxu0 %v230
    %244 = vmatprep.subr.mxu0 0.0
    %245 = vmatpush1.msra.mxu0 %v231
    %246 = vmatprep.subr.mxu0 0.0
    %247 = vmatpush1.msra.mxu0 0.0
    %248 = vmatprep.subr.mxu0 0.0
    %249 = vmatpush1.msra.mxu0 0.0
    %250 = vmatprep.subr.mxu0 0.0
    %251 = vmatpush1.msra.mxu0 0.0
    %252 = vmatprep.subr.mxu0 0.0
    %253 = vmatpush1.msra.mxu0 0.0
    %254 = vmatprep.subr.mxu0 0.0
    %255 = vmatpush1.msra.mxu0 0.0
    %256 = vmatprep.subr.mxu0 0.0
    %257 = vmatpush1.msra.mxu0 0.0
    %258 = vmatprep.subr.mxu0 0.0
    %259 = vmatpush1.msra.mxu0 0.0
    %260 = vmatprep.subr.mxu0 0.0
    %261 = vmatpush1.msra.mxu0 0.0
    %262 = vmatprep.subr.mxu0 0.0
    %263 = vmatpush1.msra.mxu0 0.0
    %264 = vmatprep.subr.mxu0 0.0
    %265 = vmatpush1.msra.mxu0 0.0
    %266 = vmatprep.subr.mxu0 0.0
    %267 = vmatpush1.msra.mxu0 0.0
    %268 = vmatprep.subr.mxu0 0.0
    %269 = vmatpush1.msra.mxu0 0.0
    %270 = vmatprep.subr.mxu0 0.0
    %271 = vmatpush1.msra.mxu0 0.0
    %272 = vmatprep.subr.mxu0 0.0
    %273 = vmatpush1.msra.mxu0 0.0
    %274 = vmatprep.subr.mxu0 0.0
    %275 = vmatpush1.msra.mxu0 0.0
    %276 = vmatprep.subr.mxu0 0.0
    %277 = vmatpush1.msra.mxu0 0.0
    %278 = vmatprep.subr.mxu0 0.0
    %279 = vmatpush1.msra.mxu0 0.0
    %280 = vmatprep.subr.mxu0 0.0
    %281 = vmatpush1.msra.mxu0 0.0
    %282 = vmatprep.subr.mxu0 0.0
    %283 = vmatpush1.msra.mxu0 0.0
    %284 = vmatprep.subr.mxu0 0.0
    %285 = vmatpush1.msra.mxu0 0.0
    %286 = vmatprep.subr.mxu0 0.0
    %287 = vmatpush1.msra.mxu0 0.0
    %288 = vmatprep.subr.mxu0 0.0
    %289 = vmatpush1.msra.mxu0 0.0
    %290 = vmatprep.subr.mxu0 0.0
    %291 = vmatpush1.msra.mxu0 0.0
    %292 = vmatprep.subr.mxu0 0.0
    %293 = vmatpush1.msra.mxu0 0.0
    %294 = vmatprep.subr.mxu0 0.0
    %295 = vmatpush1.msra.mxu0 0.0
    %296 = vmatprep.subr.mxu0 0.0
    %297 = vmatpush1.msra.mxu0 0.0
    %298 = vmatprep.subr.mxu0 0.0
    %299 = vmatpush1.msra.mxu0 0.0
    %300 = vmatprep.subr.mxu0 0.0
    %301 = vmatpush1.msra.mxu0 0.0
    %302 = vmatprep.mubr.f32.mxu0 0.0
    %303 = vmatmul.mubr.f32.gmra.mrb[0].mxu0 %v233
    %v304 = vpop.f32.mrb[0].mxu0
    %v305 = vadd.f32 0.0, %v304
    %v306 = vpop.f32.mrb[0].mxu0
    %307 = vmatprep.mubr.f32.mxu0 0.0
    %308 = vmatmul.mubr.f32.gmra.mrb[0].mxu0 %v236
    %v309 = vpop.f32.mrb[0].mxu0
    %v310 = vadd.f32 0.0, %v309
    %v311 = vpop.f32.mrb[0].mxu0
    %312 = vdwg.mxu0
    %v313 = vld [vmem:[%s2 + $0x2] sm:$0x1]
    %v314 = vlaneseq
    %v315 = vshrl.u32 %v314, 7
    %v316 = vsub.s32 0, %v315
    %v317 = vrot.slane %v313, %v316
    %v318 = vadd.f32 %v305, %v317
    %v319 = vlaneseq
    %v320 = vand.u32 %v319, 127
    %vm321 = vcmp.eq.s32.totalorder %v320, 3
    %v322 = vsel %vm321, 1.0, %v318
    %v323 = vld [vmem:[%s4] sm:$0xff]
    %v324 = vld [vmem:[%s4 + $0x8] sm:$0xff]
    %v325 = vld [vmem:[%s4 + $0x10] sm:$0xff]
    %v326 = vld [vmem:[%s4 + $0x18] sm:$0xff]
    %v328 = vsel %vm41, %v322, 0
    %330 = vmatprep.subr.mxu0 0.0
    %331 = vmatpush1.msra.mxu0 %v323
    %332 = vmatprep.subr.mxu0 0.0
    %333 = vmatpush1.msra.mxu0 %v324
    %334 = vmatprep.subr.mxu0 0.0
    %335 = vmatpush1.msra.mxu0 %v325
    %336 = vmatprep.subr.mxu0 0.0
    %337 = vmatpush1.msra.mxu0 %v326
    %338 = vmatprep.subr.mxu0 0.0
    %339 = vmatpush1.msra.mxu0 0.0
    %340 = vmatprep.subr.mxu0 0.0
    %341 = vmatpush1.msra.mxu0 0.0
    %342 = vmatprep.subr.mxu0 0.0
    %343 = vmatpush1.msra.mxu0 0.0
    %344 = vmatprep.subr.mxu0 0.0
    %345 = vmatpush1.msra.mxu0 0.0
    %346 = vmatprep.subr.mxu0 0.0
    %347 = vmatpush1.msra.mxu0 0.0
    %348 = vmatprep.subr.mxu0 0.0
    %349 = vmatpush1.msra.mxu0 0.0
    %350 = vmatprep.subr.mxu0 0.0
    %351 = vmatpush1.msra.mxu0 0.0
    %352 = vmatprep.subr.mxu0 0.0
    %353 = vmatpush1.msra.mxu0 0.0
    %354 = vmatprep.subr.mxu0 0.0
    %355 = vmatpush1.msra.mxu0 0.0
    %356 = vmatprep.subr.mxu0 0.0
    %357 = vmatpush1.msra.mxu0 0.0
    %358 = vmatprep.subr.mxu0 0.0
    %359 = vmatpush1.msra.mxu0 0.0
    %360 = vmatprep.subr.mxu0 0.0
    %361 = vmatpush1.msra.mxu0 0.0
    %362 = vmatprep.subr.mxu0 0.0
    %363 = vmatpush1.msra.mxu0 0.0
    %364 = vmatprep.subr.mxu0 0.0
    %365 = vmatpush1.msra.mxu0 0.0
    %366 = vmatprep.subr.mxu0 0.0
    %367 = vmatpush1.msra.mxu0 0.0
    %368 = vmatprep.subr.mxu0 0.0
    %369 = vmatpush1.msra.mxu0 0.0
    %370 = vmatprep.subr.mxu0 0.0
    %371 = vmatpush1.msra.mxu0 0.0
    %372 = vmatprep.subr.mxu0 0.0
    %373 = vmatpush1.msra.mxu0 0.0
    %374 = vmatprep.subr.mxu0 0.0
    %375 = vmatpush1.msra.mxu0 0.0
    %376 = vmatprep.subr.mxu0 0.0
    %377 = vmatpush1.msra.mxu0 0.0
    %378 = vmatprep.subr.mxu0 0.0
    %379 = vmatpush1.msra.mxu0 0.0
    %380 = vmatprep.subr.mxu0 0.0
    %381 = vmatpush1.msra.mxu0 0.0
    %382 = vmatprep.subr.mxu0 0.0
    %383 = vmatpush1.msra.mxu0 0.0
    %384 = vmatprep.subr.mxu0 0.0
    %385 = vmatpush1.msra.mxu0 0.0
    %386 = vmatprep.subr.mxu0 0.0
    %387 = vmatpush1.msra.mxu0 0.0
    %388 = vmatprep.subr.mxu0 0.0
    %389 = vmatpush1.msra.mxu0 0.0
    %390 = vmatprep.subr.mxu0 0.0
    %391 = vmatpush1.msra.mxu0 0.0
    %392 = vmatprep.subr.mxu0 0.0
    %393 = vmatpush1.msra.mxu0 0.0
    %394 = vmatprep.mubr.f32.mxu0 0.0
    %395 = vmatmul.mubr.f32.gmra.mrb[0].mxu0 %v328
    %v396 = vpop.f32.mrb[0].mxu0
    %v397 = vadd.f32 0.0, %v396
    %v398 = vpop.f32.mrb[0].mxu0
    %399 = vdwg.mxu0
    %s400 = scalar_lea.vmem %s4, 32
    %v401 = vld [vmem:[%s400] sm:$0xff]
    %v402 = vld [vmem:[%s400 + $0x8] sm:$0xff]
    %v403 = vld [vmem:[%s400 + $0x10] sm:$0xff]
    %v404 = vld [vmem:[%s400 + $0x18] sm:$0xff]
    %405 = vmatprep.subr.mxu0 0.0
    %406 = vmatpush1.msra.mxu0 %v401
    %407 = vmatprep.subr.mxu0 0.0
    %408 = vmatpush1.msra.mxu0 %v402
    %409 = vmatprep.subr.mxu0 0.0
    %410 = vmatpush1.msra.mxu0 %v403
    %411 = vmatprep.subr.mxu0 0.0
    %412 = vmatpush1.msra.mxu0 %v404
    %413 = vmatprep.subr.mxu0 0.0
    %414 = vmatpush1.msra.mxu0 0.0
    %415 = vmatprep.subr.mxu0 0.0
    %416 = vmatpush1.msra.mxu0 0.0
    %417 = vmatprep.subr.mxu0 0.0
    %418 = vmatpush1.msra.mxu0 0.0
    %419 = vmatprep.subr.mxu0 0.0
    %420 = vmatpush1.msra.mxu0 0.0
    %421 = vmatprep.subr.mxu0 0.0
    %422 = vmatpush1.msra.mxu0 0.0
    %423 = vmatprep.subr.mxu0 0.0
    %424 = vmatpush1.msra.mxu0 0.0
    %425 = vmatprep.subr.mxu0 0.0
    %426 = vmatpush1.msra.mxu0 0.0
    %427 = vmatprep.subr.mxu0 0.0
    %428 = vmatpush1.msra.mxu0 0.0
    %429 = vmatprep.subr.mxu0 0.0
    %430 = vmatpush1.msra.mxu0 0.0
    %431 = vmatprep.subr.mxu0 0.0
    %432 = vmatpush1.msra.mxu0 0.0
    %433 = vmatprep.subr.mxu0 0.0
    %434 = vmatpush1.msra.mxu0 0.0
    %435 = vmatprep.subr.mxu0 0.0
    %436 = vmatpush1.msra.mxu0 0.0
    %437 = vmatprep.subr.mxu0 0.0
    %438 = vmatpush1.msra.mxu0 0.0
    %439 = vmatprep.subr.mxu0 0.0
    %440 = vmatpush1.msra.mxu0 0.0
    %441 = vmatprep.subr.mxu0 0.0
    %442 = vmatpush1.msra.mxu0 0.0
    %443 = vmatprep.subr.mxu0 0.0
    %444 = vmatpush1.msra.mxu0 0.0
    %445 = vmatprep.subr.mxu0 0.0
    %446 = vmatpush1.msra.mxu0 0.0
    %447 = vmatprep.subr.mxu0 0.0
    %448 = vmatpush1.msra.mxu0 0.0
    %449 = vmatprep.subr.mxu0 0.0
    %450 = vmatpush1.msra.mxu0 0.0
    %451 = vmatprep.subr.mxu0 0.0
    %452 = vmatpush1.msra.mxu0 0.0
    %453 = vmatprep.subr.mxu0 0.0
    %454 = vmatpush1.msra.mxu0 0.0
    %455 = vmatprep.subr.mxu0 0.0
    %456 = vmatpush1.msra.mxu0 0.0
    %457 = vmatprep.subr.mxu0 0.0
    %458 = vmatpush1.msra.mxu0 0.0
    %459 = vmatprep.subr.mxu0 0.0
    %460 = vmatpush1.msra.mxu0 0.0
    %461 = vmatprep.subr.mxu0 0.0
    %462 = vmatpush1.msra.mxu0 0.0
    %463 = vmatprep.subr.mxu0 0.0
    %464 = vmatpush1.msra.mxu0 0.0
    %465 = vmatprep.subr.mxu0 0.0
    %466 = vmatpush1.msra.mxu0 0.0
    %467 = vmatprep.subr.mxu0 0.0
    %468 = vmatpush1.msra.mxu0 0.0
    %469 = vmatprep.mubr.f32.mxu0 0.0
    %470 = vmatmul.mubr.f32.gmra.mrb[0].mxu0 %v328
    %v471 = vpop.f32.mrb[0].mxu0
    %v472 = vadd.f32 0.0, %v471
    %v473 = vpop.f32.mrb[0].mxu0
    %474 = vdwg.mxu0
    %v475 = vmul.f32 %v397, %v472
    %s476 = scalar_lea.vmem %s4, 64
    %v477 = vld [vmem:[%s476] sm:$0xff]
    %v478 = vld [vmem:[%s476 + $0x8] sm:$0xff]
    %v479 = vld [vmem:[%s476 + $0x10] sm:$0xff]
    %v480 = vld [vmem:[%s476 + $0x18] sm:$0xff]
    %481 = vmatprep.subr.mxu0 0.0
    %482 = vmatpush1.msra.mxu0 %v477
    %483 = vmatprep.subr.mxu0 0.0
    %484 = vmatpush1.msra.mxu0 %v478
    %485 = vmatprep.subr.mxu0 0.0
    %486 = vmatpush1.msra.mxu0 %v479
    %487 = vmatprep.subr.mxu0 0.0
    %488 = vmatpush1.msra.mxu0 %v480
    %489 = vmatprep.subr.mxu0 0.0
    %490 = vmatpush1.msra.mxu0 0.0
    %491 = vmatprep.subr.mxu0 0.0
    %492 = vmatpush1.msra.mxu0 0.0
    %493 = vmatprep.subr.mxu0 0.0
    %494 = vmatpush1.msra.mxu0 0.0
    %495 = vmatprep.subr.mxu0 0.0
    %496 = vmatpush1.msra.mxu0 0.0
    %497 = vmatprep.subr.mxu0 0.0
    %498 = vmatpush1.msra.mxu0 0.0
    %499 = vmatprep.subr.mxu0 0.0
    %500 = vmatpush1.msra.mxu0 0.0
    %501 = vmatprep.subr.mxu0 0.0
    %502 = vmatpush1.msra.mxu0 0.0
    %503 = vmatprep.subr.mxu0 0.0
    %504 = vmatpush1.msra.mxu0 0.0
    %505 = vmatprep.subr.mxu0 0.0
    %506 = vmatpush1.msra.mxu0 0.0
    %507 = vmatprep.subr.mxu0 0.0
    %508 = vmatpush1.msra.mxu0 0.0
    %509 = vmatprep.subr.mxu0 0.0
    %510 = vmatpush1.msra.mxu0 0.0
    %511 = vmatprep.subr.mxu0 0.0
    %512 = vmatpush1.msra.mxu0 0.0
    %513 = vmatprep.subr.mxu0 0.0
    %514 = vmatpush1.msra.mxu0 0.0
    %515 = vmatprep.subr.mxu0 0.0
    %516 = vmatpush1.msra.mxu0 0.0
    %517 = vmatprep.subr.mxu0 0.0
    %518 = vmatpush1.msra.mxu0 0.0
    %519 = vmatprep.subr.mxu0 0.0
    %520 = vmatpush1.msra.mxu0 0.0
    %521 = vmatprep.subr.mxu0 0.0
    %522 = vmatpush1.msra.mxu0 0.0
    %523 = vmatprep.subr.mxu0 0.0
    %524 = vmatpush1.msra.mxu0 0.0
    %525 = vmatprep.subr.mxu0 0.0
    %526 = vmatpush1.msra.mxu0 0.0
    %527 = vmatprep.subr.mxu0 0.0
    %528 = vmatpush1.msra.mxu0 0.0
    %529 = vmatprep.subr.mxu0 0.0
    %530 = vmatpush1.msra.mxu0 0.0
    %531 = vmatprep.subr.mxu0 0.0
    %532 = vmatpush1.msra.mxu0 0.0
    %533 = vmatprep.subr.mxu0 0.0
    %534 = vmatpush1.msra.mxu0 0.0
    %535 = vmatprep.subr.mxu0 0.0
    %536 = vmatpush1.msra.mxu0 0.0
    %537 = vmatprep.subr.mxu0 0.0
    %538 = vmatpush1.msra.mxu0 0.0
    %539 = vmatprep.subr.mxu0 0.0
    %540 = vmatpush1.msra.mxu0 0.0
    %541 = vmatprep.subr.mxu0 0.0
    %542 = vmatpush1.msra.mxu0 0.0
    %543 = vmatprep.subr.mxu0 0.0
    %544 = vmatpush1.msra.mxu0 0.0
    %545 = vmatprep.mubr.f32.mxu0 0.0
    %546 = vmatmul.mubr.f32.gmra.mrb[0].mxu0 %v328
    %v547 = vpop.f32.mrb[0].mxu0
    %v548 = vadd.f32 0.0, %v547
    %v549 = vpop.f32.mrb[0].mxu0
    %550 = vdwg.mxu0
    %v551 = vmul.f32 %v475, %v548
    %v552 = vld [vmem:[%s3] sm:$0xff]
    %v553 = vld [vmem:[%s3 + $0x8] sm:$0xff]
    %v554 = vld [vmem:[%s3 + $0x10] sm:$0xf]
    %vm555 = vcmask 162816
    %v557 = vsel %vm555, %v551, 0
    %vm559 = vcmask 1043456
    %v561 = vsel %vm559, %v554, 0
    %563 = vmatprep.subr.mxu0 0.0
    %564 = vmatpush1.msra.mxu0 %v552
    %565 = vmatprep.subr.mxu0 0.0
    %566 = vmatpush1.msra.mxu0 %v553
    %567 = vmatprep.subr.mxu0 0.0
    %568 = vmatpush1.msra.mxu0 %v561
    %569 = vmatprep.subr.mxu0 0.0
    %570 = vmatpush1.msra.mxu0 0.0
    %571 = vmatprep.subr.mxu0 0.0
    %572 = vmatpush1.msra.mxu0 0.0
    %573 = vmatprep.subr.mxu0 0.0
    %574 = vmatpush1.msra.mxu0 0.0
    %575 = vmatprep.subr.mxu0 0.0
    %576 = vmatpush1.msra.mxu0 0.0
    %577 = vmatprep.subr.mxu0 0.0
    %578 = vmatpush1.msra.mxu0 0.0
    %579 = vmatprep.subr.mxu0 0.0
    %580 = vmatpush1.msra.mxu0 0.0
    %581 = vmatprep.subr.mxu0 0.0
    %582 = vmatpush1.msra.mxu0 0.0
    %583 = vmatprep.subr.mxu0 0.0
    %584 = vmatpush1.msra.mxu0 0.0
    %585 = vmatprep.subr.mxu0 0.0
    %586 = vmatpush1.msra.mxu0 0.0
    %587 = vmatprep.subr.mxu0 0.0
    %588 = vmatpush1.msra.mxu0 0.0
    %589 = vmatprep.subr.mxu0 0.0
    %590 = vmatpush1.msra.mxu0 0.0
    %591 = vmatprep.subr.mxu0 0.0
    %592 = vmatpush1.msra.mxu0 0.0
    %593 = vmatprep.subr.mxu0 0.0
    %594 = vmatpush1.msra.mxu0 0.0
    %595 = vmatprep.subr.mxu0 0.0
    %596 = vmatpush1.msra.mxu0 0.0
    %597 = vmatprep.subr.mxu0 0.0
    %598 = vmatpush1.msra.mxu0 0.0
    %599 = vmatprep.subr.mxu0 0.0
    %600 = vmatpush1.msra.mxu0 0.0
    %601 = vmatprep.subr.mxu0 0.0
    %602 = vmatpush1.msra.mxu0 0.0
    %603 = vmatprep.subr.mxu0 0.0
    %604 = vmatpush1.msra.mxu0 0.0
    %605 = vmatprep.subr.mxu0 0.0
    %606 = vmatpush1.msra.mxu0 0.0
    %607 = vmatprep.subr.mxu0 0.0
    %608 = vmatpush1.msra.mxu0 0.0
    %609 = vmatprep.subr.mxu0 0.0
    %610 = vmatpush1.msra.mxu0 0.0
    %611 = vmatprep.subr.mxu0 0.0
    %612 = vmatpush1.msra.mxu0 0.0
    %613 = vmatprep.subr.mxu0 0.0
    %614 = vmatpush1.msra.mxu0 0.0
    %615 = vmatprep.subr.mxu0 0.0
    %616 = vmatpush1.msra.mxu0 0.0
    %617 = vmatprep.subr.mxu0 0.0
    %618 = vmatpush1.msra.mxu0 0.0
    %619 = vmatprep.subr.mxu0 0.0
    %620 = vmatpush1.msra.mxu0 0.0
    %621 = vmatprep.subr.mxu0 0.0
    %622 = vmatpush1.msra.mxu0 0.0
    %623 = vmatprep.subr.mxu0 0.0
    %624 = vmatpush1.msra.mxu0 0.0
    %625 = vmatprep.subr.mxu0 0.0
    %626 = vmatpush1.msra.mxu0 0.0
    %627 = vmatprep.mubr.f32.mxu0 0.0
    %628 = vmatmul.mubr.f32.gmra.mrb[0].mxu0 %v557
    %v629 = vpop.f32.mrb[0].mxu0
    %v630 = vadd.f32 0.0, %v629
    %v631 = vpop.f32.mrb[0].mxu0
    %632 = vdwg.mxu0
    %s633 = scalar_lea.vmem [#allocation2], 96
    %v634 = vld [vmem:[%s633] sm:$0xff]
    %v635 = vld [vmem:[%s633 + $0x8] sm:$0xff]
    %v636 = vld [vmem:[%s633 + $0x10] sm:$0xff]
    %v637 = vld [vmem:[%s633 + $0x18] sm:$0xff]
    %v639 = vsel %vm41, %v318, 0
    %v642 = vsel %vm41, %v630, 0
    %644 = vmatprep.subr.mxu0 0.0
    %645 = vmatpush1.msra.mxu0 %v634
    %646 = vmatprep.subr.mxu0 0.0
    %647 = vmatpush1.msra.mxu0 %v635
    %648 = vmatprep.subr.mxu0 0.0
    %649 = vmatpush1.msra.mxu0 %v636
    %650 = vmatprep.subr.mxu0 0.0
    %651 = vmatpush1.msra.mxu0 %v637
    %652 = vmatprep.subr.mxu0 0.0
    %653 = vmatpush1.msra.mxu0 0.0
    %654 = vmatprep.subr.mxu0 0.0
    %655 = vmatpush1.msra.mxu0 0.0
    %656 = vmatprep.subr.mxu0 0.0
    %657 = vmatpush1.msra.mxu0 0.0
    %658 = vmatprep.subr.mxu0 0.0
    %659 = vmatpush1.msra.mxu0 0.0
    %660 = vmatprep.subr.mxu0 0.0
    %661 = vmatpush1.msra.mxu0 0.0
    %662 = vmatprep.subr.mxu0 0.0
    %663 = vmatpush1.msra.mxu0 0.0
    %664 = vmatprep.subr.mxu0 0.0
    %665 = vmatpush1.msra.mxu0 0.0
    %666 = vmatprep.subr.mxu0 0.0
    %667 = vmatpush1.msra.mxu0 0.0
    %668 = vmatprep.subr.mxu0 0.0
    %669 = vmatpush1.msra.mxu0 0.0
    %670 = vmatprep.subr.mxu0 0.0
    %671 = vmatpush1.msra.mxu0 0.0
    %672 = vmatprep.subr.mxu0 0.0
    %673 = vmatpush1.msra.mxu0 0.0
    %674 = vmatprep.subr.mxu0 0.0
    %675 = vmatpush1.msra.mxu0 0.0
    %676 = vmatprep.subr.mxu0 0.0
    %677 = vmatpush1.msra.mxu0 0.0
    %678 = vmatprep.subr.mxu0 0.0
    %679 = vmatpush1.msra.mxu0 0.0
    %680 = vmatprep.subr.mxu0 0.0
    %681 = vmatpush1.msra.mxu0 0.0
    %682 = vmatprep.subr.mxu0 0.0
    %683 = vmatpush1.msra.mxu0 0.0
    %684 = vmatprep.subr.mxu0 0.0
    %685 = vmatpush1.msra.mxu0 0.0
    %686 = vmatprep.subr.mxu0 0.0
    %687 = vmatpush1.msra.mxu0 0.0
    %688 = vmatprep.subr.mxu0 0.0
    %689 = vmatpush1.msra.mxu0 0.0
    %690 = vmatprep.subr.mxu0 0.0
    %691 = vmatpush1.msra.mxu0 0.0
    %692 = vmatprep.subr.mxu0 0.0
    %693 = vmatpush1.msra.mxu0 0.0
    %694 = vmatprep.subr.mxu0 0.0
    %695 = vmatpush1.msra.mxu0 0.0
    %696 = vmatprep.subr.mxu0 0.0
    %697 = vmatpush1.msra.mxu0 0.0
    %698 = vmatprep.subr.mxu0 0.0
    %699 = vmatpush1.msra.mxu0 0.0
    %700 = vmatprep.subr.mxu0 0.0
    %701 = vmatpush1.msra.mxu0 0.0
    %702 = vmatprep.subr.mxu0 0.0
    %703 = vmatpush1.msra.mxu0 0.0
    %704 = vmatprep.subr.mxu0 0.0
    %705 = vmatpush1.msra.mxu0 0.0
    %706 = vmatprep.subr.mxu0 0.0
    %707 = vmatpush1.msra.mxu0 0.0
    %708 = vmatprep.mubr.f32.mxu0 0.0
    %709 = vmatmul.mubr.f32.gmra.mrb[0].mxu0 %v639
    %v710 = vpop.f32.mrb[0].mxu0
    %v711 = vadd.f32 0.0, %v710
    %v712 = vpop.f32.mrb[0].mxu0
    %713 = vmatprep.mubr.f32.mxu0 0.0
    %714 = vmatmul.mubr.f32.gmra.mrb[0].mxu0 %v642
    %v715 = vpop.f32.mrb[0].mxu0
    %v716 = vadd.f32 0.0, %v715
    %v717 = vpop.f32.mrb[0].mxu0
    %718 = vdwg.mxu0
    %v719 = vld [vmem:[%s2 + $0x3] sm:$0x1]
    %v720 = vlaneseq
    %v721 = vshrl.u32 %v720, 7
    %v722 = vsub.s32 0, %v721
    %v723 = vrot.slane %v719, %v722
    %v724 = vadd.f32 %v711, %v723
    %v725 = vmax.f32 %v724, 0.0
    %vm726 = vcmp.gt.f32.partialorder %v724, 0.0
    %v727 = vsel %vm726, %v716, 0.0
    %s728 = scalar_lea.vmem [#allocation2], 128
    %v729 = vld [vmem:[%s728] sm:$0xff]
    %v730 = vld [vmem:[%s728 + $0x8] sm:$0xff]
    %v731 = vld [vmem:[%s728 + $0x10] sm:$0xff]
    %v732 = vld [vmem:[%s728 + $0x18] sm:$0xff]
    %v734 = vsel %vm41, %v725, 0
    %v737 = vsel %vm41, %v727, 0
    %739 = vmatprep.subr.mxu0 0.0
    %740 = vmatpush1.msra.mxu0 %v729
    %741 = vmatprep.subr.mxu0 0.0
    %742 = vmatpush1.msra.mxu0 %v730
    %743 = vmatprep.subr.mxu0 0.0
    %744 = vmatpush1.msra.mxu0 %v731
    %745 = vmatprep.subr.mxu0 0.0
    %746 = vmatpush1.msra.mxu0 %v732
    %747 = vmatprep.subr.mxu0 0.0
    %748 = vmatpush1.msra.mxu0 0.0
    %749 = vmatprep.subr.mxu0 0.0
    %750 = vmatpush1.msra.mxu0 0.0
    %751 = vmatprep.subr.mxu0 0.0
    %752 = vmatpush1.msra.mxu0 0.0
    %753 = vmatprep.subr.mxu0 0.0
    %754 = vmatpush1.msra.mxu0 0.0
    %755 = vmatprep.subr.mxu0 0.0
    %756 = vmatpush1.msra.mxu0 0.0
    %757 = vmatprep.subr.mxu0 0.0
    %758 = vmatpush1.msra.mxu0 0.0
    %759 = vmatprep.subr.mxu0 0.0
    %760 = vmatpush1.msra.mxu0 0.0
    %761 = vmatprep.subr.mxu0 0.0
    %762 = vmatpush1.msra.mxu0 0.0
    %763 = vmatprep.subr.mxu0 0.0
    %764 = vmatpush1.msra.mxu0 0.0
    %765 = vmatprep.subr.mxu0 0.0
    %766 = vmatpush1.msra.mxu0 0.0
    %767 = vmatprep.subr.mxu0 0.0
    %768 = vmatpush1.msra.mxu0 0.0
    %769 = vmatprep.subr.mxu0 0.0
    %770 = vmatpush1.msra.mxu0 0.0
    %771 = vmatprep.subr.mxu0 0.0
    %772 = vmatpush1.msra.mxu0 0.0
    %773 = vmatprep.subr.mxu0 0.0
    %774 = vmatpush1.msra.mxu0 0.0
    %775 = vmatprep.subr.mxu0 0.0
    %776 = vmatpush1.msra.mxu0 0.0
    %777 = vmatprep.subr.mxu0 0.0
    %778 = vmatpush1.msra.mxu0 0.0
    %779 = vmatprep.subr.mxu0 0.0
    %780 = vmatpush1.msra.mxu0 0.0
    %781 = vmatprep.subr.mxu0 0.0
    %782 = vmatpush1.msra.mxu0 0.0
    %783 = vmatprep.subr.mxu0 0.0
    %784 = vmatpush1.msra.mxu0 0.0
    %785 = vmatprep.subr.mxu0 0.0
    %786 = vmatpush1.msra.mxu0 0.0
    %787 = vmatprep.subr.mxu0 0.0
    %788 = vmatpush1.msra.mxu0 0.0
    %789 = vmatprep.subr.mxu0 0.0
    %790 = vmatpush1.msra.mxu0 0.0
    %791 = vmatprep.subr.mxu0 0.0
    %792 = vmatpush1.msra.mxu0 0.0
    %793 = vmatprep.subr.mxu0 0.0
    %794 = vmatpush1.msra.mxu0 0.0
    %795 = vmatprep.subr.mxu0 0.0
    %796 = vmatpush1.msra.mxu0 0.0
    %797 = vmatprep.subr.mxu0 0.0
    %798 = vmatpush1.msra.mxu0 0.0
    %799 = vmatprep.subr.mxu0 0.0
    %800 = vmatpush1.msra.mxu0 0.0
    %801 = vmatprep.subr.mxu0 0.0
    %802 = vmatpush1.msra.mxu0 0.0
    %803 = vmatprep.mubr.f32.mxu0 0.0
    %804 = vmatmul.mubr.f32.gmra.mrb[0].mxu0 %v734
    %v805 = vpop.f32.mrb[0].mxu0
    %v806 = vadd.f32 0.0, %v805
    %v807 = vpop.f32.mrb[0].mxu0
    %808 = vmatprep.mubr.f32.mxu0 0.0
    %809 = vmatmul.mubr.f32.gmra.mrb[0].mxu0 %v737
    %v810 = vpop.f32.mrb[0].mxu0
    %v811 = vadd.f32 0.0, %v810
    %v812 = vpop.f32.mrb[0].mxu0
    %813 = vdwg.mxu0
    %v814 = vld [vmem:[%s2 + $0x4] sm:$0x1]
    %v815 = vlaneseq
    %v816 = vshrl.u32 %v815, 7
    %v817 = vsub.s32 0, %v816
    %v818 = vrot.slane %v814, %v817
    %v819 = vadd.f32 %v806, %v818
    %v820 = vmax.f32 %v819, 0.0
    %vm821 = vcmp.gt.f32.partialorder %v819, 0.0
    %v822 = vsel %vm821, %v811, 0.0
    %s823 = scalar_lea.vmem [#allocation2], 160
    %v824 = vld [vmem:[%s823] sm:$0xff]
    %v825 = vld [vmem:[%s823 + $0x8] sm:$0xff]
    %v826 = vld [vmem:[%s823 + $0x10] sm:$0xff]
    %v827 = vld [vmem:[%s823 + $0x18] sm:$0xff]
    %v829 = vsel %vm41, %v820, 0
    %v832 = vsel %vm41, %v822, 0
    %834 = vmatprep.subr.mxu0 0.0
    %835 = vmatpush1.msra.mxu0 %v824
    %836 = vmatprep.subr.mxu0 0.0
    %837 = vmatpush1.msra.mxu0 %v825
    %838 = vmatprep.subr.mxu0 0.0
    %839 = vmatpush1.msra.mxu0 %v826
    %840 = vmatprep.subr.mxu0 0.0
    %841 = vmatpush1.msra.mxu0 %v827
    %842 = vmatprep.subr.mxu0 0.0
    %843 = vmatpush1.msra.mxu0 0.0
    %844 = vmatprep.subr.mxu0 0.0
    %845 = vmatpush1.msra.mxu0 0.0
    %846 = vmatprep.subr.mxu0 0.0
    %847 = vmatpush1.msra.mxu0 0.0
    %848 = vmatprep.subr.mxu0 0.0
    %849 = vmatpush1.msra.mxu0 0.0
    %850 = vmatprep.subr.mxu0 0.0
    %851 = vmatpush1.msra.mxu0 0.0
    %852 = vmatprep.subr.mxu0 0.0
    %853 = vmatpush1.msra.mxu0 0.0
    %854 = vmatprep.subr.mxu0 0.0
    %855 = vmatpush1.msra.mxu0 0.0
    %856 = vmatprep.subr.mxu0 0.0
    %857 = vmatpush1.msra.mxu0 0.0
    %858 = vmatprep.subr.mxu0 0.0
    %859 = vmatpush1.msra.mxu0 0.0
    %860 = vmatprep.subr.mxu0 0.0
    %861 = vmatpush1.msra.mxu0 0.0
    %862 = vmatprep.subr.mxu0 0.0
    %863 = vmatpush1.msra.mxu0 0.0
    %864 = vmatprep.subr.mxu0 0.0
    %865 = vmatpush1.msra.mxu0 0.0
    %866 = vmatprep.subr.mxu0 0.0
    %867 = vmatpush1.msra.mxu0 0.0
    %868 = vmatprep.subr.mxu0 0.0
    %869 = vmatpush1.msra.mxu0 0.0
    %870 = vmatprep.subr.mxu0 0.0
    %871 = vmatpush1.msra.mxu0 0.0
    %872 = vmatprep.subr.mxu0 0.0
    %873 = vmatpush1.msra.mxu0 0.0
    %874 = vmatprep.subr.mxu0 0.0
    %875 = vmatpush1.msra.mxu0 0.0
    %876 = vmatprep.subr.mxu0 0.0
    %877 = vmatpush1.msra.mxu0 0.0
    %878 = vmatprep.subr.mxu0 0.0
    %879 = vmatpush1.msra.mxu0 0.0
    %880 = vmatprep.subr.mxu0 0.0
    %881 = vmatpush1.msra.mxu0 0.0
    %882 = vmatprep.subr.mxu0 0.0
    %883 = vmatpush1.msra.mxu0 0.0
    %884 = vmatprep.subr.mxu0 0.0
    %885 = vmatpush1.msra.mxu0 0.0
    %886 = vmatprep.subr.mxu0 0.0
    %887 = vmatpush1.msra.mxu0 0.0
    %888 = vmatprep.subr.mxu0 0.0
    %889 = vmatpush1.msra.mxu0 0.0
    %890 = vmatprep.subr.mxu0 0.0
    %891 = vmatpush1.msra.mxu0 0.0
    %892 = vmatprep.subr.mxu0 0.0
    %893 = vmatpush1.msra.mxu0 0.0
    %894 = vmatprep.subr.mxu0 0.0
    %895 = vmatpush1.msra.mxu0 0.0
    %896 = vmatprep.subr.mxu0 0.0
    %897 = vmatpush1.msra.mxu0 0.0
    %898 = vmatprep.mubr.f32.mxu0 0.0
    %899 = vmatmul.mubr.f32.gmra.mrb[0].mxu0 %v829
    %v900 = vpop.f32.mrb[0].mxu0
    %v901 = vadd.f32 0.0, %v900
    %v902 = vpop.f32.mrb[0].mxu0
    %903 = vmatprep.mubr.f32.mxu0 0.0
    %904 = vmatmul.mubr.f32.gmra.mrb[0].mxu0 %v832
    %v905 = vpop.f32.mrb[0].mxu0
    %v906 = vadd.f32 0.0, %v905
    %v907 = vpop.f32.mrb[0].mxu0
    %908 = vdwg.mxu0
    %v909 = vld [vmem:[%s2 + $0x5] sm:$0x1]
    %v910 = vlaneseq
    %v911 = vshrl.u32 %v910, 7
    %v912 = vsub.s32 0, %v911
    %v913 = vrot.slane %v909, %v912
    %v914 = vadd.f32 %v901, %v913
    %916 = vrot.lane.b32.xlu0 %v914, 3
    %v917 = vpop.permute.xlu0 %916
    %920 = vrot.lane.b32.xlu0 %v310, 19
    %v921 = vpop.permute.xlu0 %920
    %924 = vrot.lane.b32.xlu0 %v906, 22
    %v925 = vpop.permute.xlu0 %924
    %927 = vrot.lane.b32.xlu0 %v551, 38
    %v928 = vpop.permute.xlu0 %927
    %930 = vrot.lane.b32.xlu0 %v630, 58
    %v931 = vpop.permute.xlu0 %930
    %vm933 = vcmask 23552
    %v934 = vsel %vm933, %v318, %v917
    %vm935 = vcmask 154624
    %v936 = vsel %vm935, %v934, %v921
    %vm937 = vcmask 179200
    %v938 = vsel %vm937, %v936, %v925
    %vm939 = vcmask 310272
    %v940 = vsel %vm939, %v938, %v928
    %vm941 = vcmask 474112
    %v942 = vsel %vm941, %v940, %v931
    %vm943 = vcmask 498688
    %v944 = vsel %vm943, %v942, 0.0
    %945 = vst [vmem:[#allocation5] sm:$0xff] %v944
    // Predicated region
    $region26: #{tpu_custom_call.1} parent=1 // pred_check
      _
    $region27: #{tpu_custom_call.1} parent=1 // pred_check_branch
      %947 = sbr.rel (0) target = $region29
    $region28: #{tpu_custom_call.1} parent=1 // pred_region
      %s949 = ssub.s32 128, 128
      %950 = vsyncadd [#allocation4], %s949
      %s952 = sshll.u32 [#allocation5], 4
      %s953 = int_to_ptr.vmem [resolvable:$true] %s952
      %955 = dma.vmem_to_hbm [thread:$0]  %s953, 128, %s5, [#allocation4]
    $region29: #{tpu_custom_call.1} parent=1 // pred_fallthru
      _
    // Predicated region
    $region30: #{tpu_custom_call.1} parent=1 // pred_check
      _
    $region31: #{tpu_custom_call.1} parent=1 // pred_check_branch
      %957 = sbr.rel (0) target = $region33
    $region32: #{tpu_custom_call.1} parent=1 // pred_region
      %958 = dma.done [#allocation4], 128
    $region33: #{tpu_custom_call.1} parent=1 // pred_fallthru
      _
    %959 = vsyncpa [#allocation3], 1
    %960 = vsyncpa [#allocation4], 1

</llo_original>
